<compile_context>
chip_gen: v7x
topology: tpu7x:2x2x1
jax: 0.10.0
libtpu: 0.0.40
codegen_flags: <defaults>
</compile_context>

<pallas_src>
import functools

import jax
import jax.numpy as jnp
from jax import lax
from jax.experimental import pallas as pl
from jax.experimental.pallas import tpu as pltpu

_LANE = 128


def _channel_attention_kernel(x_ref, w1t_ref, w2t_ref, o_ref,
                              sum_acc, max_acc, *,
                              hw_total, thw, need_mask, use_mxu_sum, acc_lanes):
    k = pl.program_id(1)
    n_k = pl.num_programs(1)
    tn, C, _ = x_ref.shape

    @pl.when(k == 0)
    def _init():
        sum_acc[...] = jnp.zeros_like(sum_acc)
        max_acc[...] = jnp.full_like(max_acc, -jnp.inf)

    # Single HBM->VMEM read per tile, in the input's native dtype (no full-tile
    # f32 cast on the streaming path).
    x = x_ref[...]                                          # (tn, C, thw)

    def _accumulate(x_sum, x_max):
        # max-pool: VPU/XLU lane reduce in native dtype; only the tiny (tn, C)
        # partial result is cast to f32.
        m = jnp.max(x_max, axis=-1).astype(jnp.float32)     # (tn, C)
        max_acc[...] = jnp.maximum(max_acc[...], m)
        # sum-pool:
        if use_mxu_sum:
            # MXU does the bf16 multiply + f32 accumulate for free while HBM
            # streams; the VPU only pays a small (tn*C, acc_lanes) add.
            # Leading-dim collapse is layout-free (wrapper guards C % 16 == 0).
            x2d = x_sum.reshape(tn * C, thw)
            ones = jnp.ones((thw, acc_lanes), dtype=x_sum.dtype)
            sum_acc[...] += jnp.dot(x2d, ones,
                                    preferred_element_type=jnp.float32)
        else:
            xs = x_sum if x_sum.dtype == jnp.float32 else x_sum.astype(jnp.float32)
            sum_acc[...] += jnp.sum(xs, axis=-1)            # (tn, C)

    if need_mask:
        # Bulk tiles: no masking work at all -> stays memory-bound.
        @pl.when(k < n_k - 1)
        def _bulk():
            _accumulate(x, x)

        # Only the ragged LAST spatial tile pays iota/compare/select; padded
        # lanes hold unspecified data -> 0 for the sum, -inf for the max.
        @pl.when(k == n_k - 1)
        def _last():
            lane = lax.broadcasted_iota(jnp.int32, x.shape, 2)
            valid = (k * thw + lane) < hw_total
            zero = jnp.zeros((), x.dtype)
            ninf = jnp.asarray(-jnp.inf, x.dtype)
            _accumulate(jnp.where(valid, x, zero), jnp.where(valid, x, ninf))
    else:
        _accumulate(x, x)

    @pl.when(k == n_k - 1)
    def _finalize():
        if use_mxu_sum:
            # Every accumulator lane holds the same total -> fold the lane
            # count into the averaging scale. Leading-dim split is layout-free.
            acc3 = sum_acc[...].reshape(tn, C, acc_lanes)
            avg = jnp.sum(acc3, axis=-1) * (1.0 / (acc_lanes * hw_total))
        else:
            avg = sum_acc[...] * (1.0 / hw_total)           # (tn, C)
        mx = max_acc[...]                                   # (tn, C)
        # Fuse both branches: one dot per weight instead of two.  All finalize
        # math is row-local in M, so padded batch rows never contaminate
        # valid ones (they are dropped on writeback).
        pooled = jnp.concatenate([avg, mx], axis=0)         # (2*tn, C)
        h = jnp.maximum(
            jnp.dot(pooled, w1t_ref[...],
                    preferred_element_type=jnp.float32), 0.0)    # (2*tn, Cr)
        y = jnp.dot(h, w2t_ref[...],
                    preferred_element_type=jnp.float32)          # (2*tn, C)
        out = y[:tn, :] + y[tn:, :]                         # avg + max branch
        o_ref[...] = jax.nn.sigmoid(out).astype(o_ref.dtype)


def channel_attention(x_nchw, w_fc1, w_fc2, *, tile_budget_bytes=None):
    """ChannelAttention forward.

    x_nchw: (N, C, H, W), native dtype (f32/bf16/...).
    w_fc1:  (Cr, C)  == fc1.weight[:, :, 0, 0]
    w_fc2:  (C, Cr)  == fc2.weight[:, :, 0, 0]
    Returns sigmoid(fc2(relu(fc1(avg))) + fc2(relu(fc1(max)))) as (N, C, 1, 1)
    in the input's dtype.
    """
    N, C, H, W = x_nchw.shape
    Cr = w_fc1.shape[0]
    assert w_fc1.shape == (Cr, C) and w_fc2.shape == (C, Cr)
    HW = H * W

    # Free, contiguous reshape; NO dtype cast here (that would cost a full
    # extra HBM pass over the activation before the kernel even starts).
    x_flat = x_nchw.reshape(N, C, HW)
    dtype = x_flat.dtype
    itemsize = jnp.dtype(dtype).itemsize
    w1t = jnp.asarray(w_fc1, jnp.float32).T                 # (C, Cr)
    w2t = jnp.asarray(w_fc2, jnp.float32).T                 # (Cr, C)

    # ---- generation-aware budgets -------------------------------------------
    try:
        vmem_cap = int(pltpu.get_tpu_info().vmem_capacity_bytes)
    except Exception:
        vmem_cap = 64 * 1024 * 1024                          # assume smallest (v7x)
    small_vmem = vmem_cap <= (64 << 20)                      # v7x-class chip
    if tile_budget_bytes is None:
        # ~12 MiB x-tiles on 64 MiB-VMEM chips, ~16 MiB on 128 MiB chips
        # (double-buffered by the BlockSpec pipeline).
        tile_budget_bytes = (12 if small_vmem else 16) * 1024 * 1024

    # bf16 sum-pool goes through the MXU (needs layout-free leading-dim
    # collapse -> C multiple of 16).  f32 stays on the VPU: no cast is needed
    # and it is comfortably HBM-bound there.
    use_mxu_sum = (dtype == jnp.bfloat16) and (C % 16 == 0)
    ACC_LANES = _LANE
    ones_rows = _LANE if use_mxu_sum else 0                  # in-kernel ones matrix

    min_rows = min(8, N)                                     # output sublane granule
    # 2-TensorCore chips: keep >= 2 iterations on the parallel batch axis
    # whenever N allows, so both cores get work.
    if small_vmem and N >= 16:
        max_tn = min(N, ((pl.cdiv(N, 2) + 7) // 8) * 8)
    else:
        max_tn = N

    def _clamp_tn(t):
        t = min(t, max_tn)
        if t >= N:
            return N
        return max(min_rows, (t // 8) * 8)                   # multiple of 8 (or full N)

    budget_elems = tile_budget_bytes // itemsize
    if (min_rows * C + ones_rows) * HW <= budget_elems:
        # Whole spatial extent per step: single reduction step, no mask.
        thw = HW
        tn = _clamp_tn(max(min_rows, (budget_elems // HW - ones_rows) // C))
    else:
        # Tile the spatial axis.  Prefer a multiple of 128 that divides HW so
        # the ragged-tile mask disappears; spend leftover budget on batch rows.
        cap = (budget_elems // (min_rows * C + ones_rows)) // _LANE * _LANE
        cap = max(_LANE, cap)
        thw = cap
        t = cap
        while t >= _LANE:
            if HW % t == 0:
                thw = t
                break
            t -= _LANE
        tn = _clamp_tn(max(min_rows, (budget_elems // thw - ones_rows) // C))
    need_mask = (HW % thw) != 0

    grid = (pl.cdiv(N, tn), pl.cdiv(HW, thw))

    # ---- explicit VMEM footprint -> vmem_limit_bytes --------------------------
    pad = lambda v, m: -(-v // m) * m
    x_tile_bytes = tn * C * thw * itemsize
    out_bytes = pad(tn, 8) * pad(C, _LANE) * itemsize
    w_bytes = (pad(C, 8) * pad(Cr, _LANE) + pad(Cr, 8) * pad(C, _LANE)) * 4
    max_acc_bytes = pad(tn, 8) * pad(C, _LANE) * 4
    if use_mxu_sum:
        sum_acc_bytes = pad(tn * C, 8) * ACC_LANES * 4
        ones_bytes = thw * _LANE * itemsize
    else:
        sum_acc_bytes = pad(tn, 8) * pad(C, _LANE) * 4
        ones_bytes = 0
    need = (2 * x_tile_bytes + 2 * (w_bytes + out_bytes)
            + sum_acc_bytes + max_acc_bytes + ones_bytes)
    vmem_limit = int(need * 1.25) + (6 << 20)                # pipeline + compiler slack
    vmem_limit = max(vmem_limit, 32 << 20)
    vmem_limit = min(vmem_limit, (vmem_cap * 3) // 4)

    kernel = functools.partial(
        _channel_attention_kernel,
        hw_total=HW, thw=thw, need_mask=need_mask,
        use_mxu_sum=use_mxu_sum, acc_lanes=ACC_LANES)

    sum_scratch = (pltpu.VMEM((tn * C, ACC_LANES), jnp.float32) if use_mxu_sum
                   else pltpu.VMEM((tn, C), jnp.float32))

    out = pl.pallas_call(
        kernel,
        out_shape=jax.ShapeDtypeStruct((N, C), dtype),
        grid_spec=pltpu.PrefetchScalarGridSpec(
            num_scalar_prefetch=0,
            grid=grid,
            in_specs=[
                # (If profiling ever shows exposed DMA on short grids, this is
                # the spec to give pipeline_mode=pl.Buffered(3); footprint math
                # above leaves headroom for it.)
                pl.BlockSpec((tn, C, thw), lambda n, k: (n, 0, k)),
                pl.BlockSpec((C, Cr), lambda n, k: (0, 0)),
                pl.BlockSpec((Cr, C), lambda n, k: (0, 0)),
            ],
            out_specs=pl.BlockSpec((tn, C), lambda n, k: (n, 0)),
            scratch_shapes=[
                sum_scratch,                                 # running sum
                pltpu.VMEM((tn, C), jnp.float32),            # running max
            ],
        ),
        compiler_params=pltpu.CompilerParams(
            dimension_semantics=("parallel", "arbitrary"),
            vmem_limit_bytes=int(vmem_limit),
        ),
    )(x_flat, w1t, w2t)
    return out.reshape(N, C, 1, 1)


if __name__ == "__main__":
    # Module config: in_planes=16, ratio=8 -> hidden Cr = 2
    N, C, H, W = 2, 16, 16, 16
    ratio = 8
    Cr = C // ratio

    key = jax.random.PRNGKey(0)
    kx, k1, k2 = jax.random.split(key, 3)
    x = jax.random.normal(kx, (N, C, H, W), dtype=jnp.float32)
    # Deterministic synthetic weights for the 1x1 convs (no bias).
    w_fc1 = jax.random.normal(k1, (Cr, C), dtype=jnp.float32) * 0.1  # fc1.weight[:, :, 0, 0]
    w_fc2 = jax.random.normal(k2, (C, Cr), dtype=jnp.float32) * 0.1  # fc2.weight[:, :, 0, 0]

    def reference(xr):
        avg = jnp.mean(xr, axis=(2, 3))                      # (N, C)
        mx = jnp.max(xr, axis=(2, 3))                        # (N, C)
        out = (jnp.maximum(avg @ w_fc1.T, 0.0) @ w_fc2.T
               + jnp.maximum(mx @ w_fc1.T, 0.0) @ w_fc2.T)
        return jax.nn.sigmoid(out).reshape(xr.shape[0], xr.shape[1], 1, 1)

    # Case 1: default tiling (whole spatial extent per step, no mask path).
    y = channel_attention(x, w_fc1, w_fc2)
    jax.block_until_ready(y)
    assert y.shape == (N, C, 1, 1) and y.dtype == x.dtype
    assert jnp.allclose(y, reference(x), atol=1e-5), "case 1 mismatch vs reference"

    # Case 2: a tiny tile budget forces spatial tiling with a ragged last tile
    # (HW = 400 is not a multiple of 128), exercising the multi-step reduction
    # and the pl.when-gated mask path.
    x2 = jax.random.normal(kx, (N, C, 20, 20), dtype=jnp.float32)
    y2 = channel_attention(x2, w_fc1, w_fc2, tile_budget_bytes=16 * 1024)
    jax.block_until_ready(y2)
    assert jnp.allclose(y2, reference(x2), atol=1e-5), "case 2 mismatch vs reference"

    print("KERNEL_OK")
</pallas_src>

<mosaic_0001>
module attributes {stable_mosaic.version = 11 : i64} {
  func.func @_channel_attention_kernel(%arg0: i32, %arg1: i32, %arg2: memref<2x16x256xf32, #tpu.memory_space<vmem>>, %arg3: memref<16x2xf32, #tpu.memory_space<vmem>>, %arg4: memref<2x16xf32, #tpu.memory_space<vmem>>, %arg5: memref<2x16xf32, #tpu.memory_space<vmem>>, %arg6: memref<2x16xf32, #tpu.memory_space<vmem>>, %arg7: memref<2x16xf32, #tpu.memory_space<vmem>>) attributes {dimension_semantics = [#tpu.dimension_semantics<parallel>, #tpu.dimension_semantics<arbitrary>], iteration_bounds = array<i64: 1, 1>, scalar_prefetch = 0 : i64, scratch_operands = 2 : i64, tpu.core_type = #tpu.core_type<tc>, window_params = [{transform_indices = @transform_0, window_bounds = array<i64: 2, 16, 256>}, {pipeline_mode = #tpu.pipeline_mode<synchronous>, transform_indices = @transform_1, window_bounds = array<i64: 16, 2>}, {pipeline_mode = #tpu.pipeline_mode<synchronous>, transform_indices = @transform_2, window_bounds = array<i64: 2, 16>}, {transform_indices = @transform_3, window_bounds = array<i64: 2, 16>}]} {
    %c0_i32 = arith.constant 0 : i32
    %0 = arith.cmpi eq, %arg1, %c0_i32 : i32
    %1 = arith.extui %0 : i1 to i32
    %c0_i32_0 = arith.constant 0 : i32
    %2 = arith.cmpi ne, %1, %c0_i32_0 : i32
    scf.if %2 {
      %cst_14 = arith.constant 0.000000e+00 : f32
      %15 = vector.broadcast %cst_14 : f32 to vector<2x16xf32>
      %c0_15 = arith.constant 0 : index
      %c0_16 = arith.constant 0 : index
      %16 = vector.load %arg6[%c0_15, %c0_16] : memref<2x16xf32, #tpu.memory_space<vmem>>, vector<2x16xf32>
      tpu.vector_store %arg6[%c0_15, %c0_16], %15 {strides = array<i32>} : memref<2x16xf32, #tpu.memory_space<vmem>>, vector<2x16xf32>,
      %cst_17 = arith.constant 0xFF800000 : f32
      %17 = vector.broadcast %cst_17 : f32 to vector<2x16xf32>
      %c0_18 = arith.constant 0 : index
      %c0_19 = arith.constant 0 : index
      %18 = vector.load %arg7[%c0_18, %c0_19] : memref<2x16xf32, #tpu.memory_space<vmem>>, vector<2x16xf32>
      tpu.vector_store %arg7[%c0_18, %c0_19], %17 {strides = array<i32>} : memref<2x16xf32, #tpu.memory_space<vmem>>, vector<2x16xf32>,
    } else {
    }
    %c0 = arith.constant 0 : index
    %c0_1 = arith.constant 0 : index
    %c0_2 = arith.constant 0 : index
    %3 = vector.load %arg2[%c0, %c0_1, %c0_2] : memref<2x16x256xf32, #tpu.memory_space<vmem>>, vector<2x16x256xf32>
    %cst = arith.constant dense<0xFF800000> : vector<2x16xf32>
    %4 = vector.multi_reduction <maximumf>, %3, %cst [2] : vector<2x16x256xf32> to vector<2x16xf32>
    %c0_3 = arith.constant 0 : index
    %c0_4 = arith.constant 0 : index
    %5 = vector.load %arg7[%c0_3, %c0_4] : memref<2x16xf32, #tpu.memory_space<vmem>>, vector<2x16xf32>
    %6 = arith.maximumf %5, %4 : vector<2x16xf32>
    %c0_5 = arith.constant 0 : index
    %c0_6 = arith.constant 0 : index
    %7 = vector.load %arg7[%c0_5, %c0_6] : memref<2x16xf32, #tpu.memory_space<vmem>>, vector<2x16xf32>
    tpu.vector_store %arg7[%c0_5, %c0_6], %6 {strides = array<i32>} : memref<2x16xf32, #tpu.memory_space<vmem>>, vector<2x16xf32>,
    %c0_7 = arith.constant 0 : index
    %c0_8 = arith.constant 0 : index
    %8 = vector.load %arg6[%c0_7, %c0_8] : memref<2x16xf32, #tpu.memory_space<vmem>>, vector<2x16xf32>
    %cst_9 = arith.constant dense<0.000000e+00> : vector<2x16xf32>
    %9 = vector.multi_reduction <add>, %3, %cst_9 [2] : vector<2x16x256xf32> to vector<2x16xf32>
    %10 = arith.addf %8, %9 : vector<2x16xf32>
    %c0_10 = arith.constant 0 : index
    %c0_11 = arith.constant 0 : index
    %11 = vector.load %arg6[%c0_10, %c0_11] : memref<2x16xf32, #tpu.memory_space<vmem>>, vector<2x16xf32>
    tpu.vector_store %arg6[%c0_10, %c0_11], %10 {strides = array<i32>} : memref<2x16xf32, #tpu.memory_space<vmem>>, vector<2x16xf32>,
    %c0_i32_12 = arith.constant 0 : i32
    %12 = arith.cmpi eq, %arg1, %c0_i32_12 : i32
    %13 = arith.extui %12 : i1 to i32
    %c0_i32_13 = arith.constant 0 : i32
    %14 = arith.cmpi ne, %13, %c0_i32_13 : i32
    scf.if %14 {
      %c0_14 = arith.constant 0 : index
      %c0_15 = arith.constant 0 : index
      %15 = vector.load %arg6[%c0_14, %c0_15] : memref<2x16xf32, #tpu.memory_space<vmem>>, vector<2x16xf32>
      %cst_16 = arith.constant 3.906250e-03 : f32
      %16 = vector.broadcast %cst_16 : f32 to vector<2x16xf32>
      %17 = arith.mulf %15, %16 : vector<2x16xf32>
      %c0_17 = arith.constant 0 : index
      %c0_18 = arith.constant 0 : index
      %18 = vector.load %arg7[%c0_17, %c0_18] : memref<2x16xf32, #tpu.memory_space<vmem>>, vector<2x16xf32>
      %19 = tpu.concatenate %17, %18 in 0 : vector<2x16xf32>, vector<2x16xf32> -> vector<4x16xf32>
      %c0_19 = arith.constant 0 : index
      %c0_20 = arith.constant 0 : index
      %20 = vector.load %arg3[%c0_19, %c0_20] : memref<16x2xf32, #tpu.memory_space<vmem>>, vector<16x2xf32>
      %cst_21 = arith.constant dense<0.000000e+00> : vector<4x2xf32>
      %21 = tpu.matmul %19, %20, %cst_21 {dimension_numbers = #tpu.dot_dimension_numbers<[1], [0], [0], [1], [0, 0, 1, 1], [], []>} : vector<4x16xf32>, vector<16x2xf32>, vector<4x2xf32> -> vector<4x2xf32>
      %cst_22 = arith.constant 0.000000e+00 : f32
      %22 = vector.broadcast %cst_22 : f32 to vector<4x2xf32>
      %23 = arith.maximumf %21, %22 : vector<4x2xf32>
      %c0_23 = arith.constant 0 : index
      %c0_24 = arith.constant 0 : index
      %24 = vector.load %arg4[%c0_23, %c0_24] : memref<2x16xf32, #tpu.memory_space<vmem>>, vector<2x16xf32>
      %cst_25 = arith.constant dense<0.000000e+00> : vector<4x16xf32>
      %25 = tpu.matmul %23, %24, %cst_25 {dimension_numbers = #tpu.dot_dimension_numbers<[1], [0], [0], [1], [0, 0, 1, 1], [], []>} : vector<4x2xf32>, vector<2x16xf32>, vector<4x16xf32> -> vector<4x16xf32>
      %26 = vector.extract_strided_slice %25 {offsets = [0, 0], sizes = [2, 16], strides = [1, 1]} : vector<4x16xf32> to vector<2x16xf32>
      %27 = vector.extract_strided_slice %25 {offsets = [2, 0], sizes = [2, 16], strides = [1, 1]} : vector<4x16xf32> to vector<2x16xf32>
      %28 = arith.addf %26, %27 : vector<2x16xf32>
      %29 = arith.negf %28 : vector<2x16xf32>
      %30 = math.exp %29 : vector<2x16xf32>
      %cst_26 = arith.constant 1.000000e+00 : f32
      %31 = vector.broadcast %cst_26 : f32 to vector<2x16xf32>
      %32 = arith.addf %31, %30 : vector<2x16xf32>
      %33 = arith.divf %31, %32 : vector<2x16xf32>
      %c0_27 = arith.constant 0 : index
      %c0_28 = arith.constant 0 : index
      %34 = vector.load %arg5[%c0_27, %c0_28] : memref<2x16xf32, #tpu.memory_space<vmem>>, vector<2x16xf32>
      tpu.vector_store %arg5[%c0_27, %c0_28], %33 {strides = array<i32>} : memref<2x16xf32, #tpu.memory_space<vmem>>, vector<2x16xf32>,
    } else {
    }
    return
  }
  func.func @transform_0(%arg0: i32, %arg1: i32) -> (i32, i32, i32) {
    %c0_i32 = arith.constant 0 : i32
    %c0_i32_0 = arith.constant 0 : i32
    return %arg0, %c0_i32, %arg1 : i32, i32, i32
  }
  func.func @transform_1(%arg0: i32, %arg1: i32) -> (i32, i32) {
    %c0_i32 = arith.constant 0 : i32
    %c0_i32_0 = arith.constant 0 : i32
    %c0_i32_1 = arith.constant 0 : i32
    return %c0_i32, %c0_i32_0 : i32, i32
  }
  func.func @transform_2(%arg0: i32, %arg1: i32) -> (i32, i32) {
    %c0_i32 = arith.constant 0 : i32
    %c0_i32_0 = arith.constant 0 : i32
    %c0_i32_1 = arith.constant 0 : i32
    return %c0_i32, %c0_i32_0 : i32, i32
  }
  func.func @transform_3(%arg0: i32, %arg1: i32) -> (i32, i32) {
    %c0_i32 = arith.constant 0 : i32
    %c0_i32_0 = arith.constant 0 : i32
    return %arg0, %c0_i32 : i32, i32
  }
}

</mosaic_0001>

<llo_original>
// kernel: tpu_custom_call.1
$region0: #{tpu_custom_call.1}
  #allocation0 [shape = 'u32[]', space=smem, size = 0x4, offset = 0x4, fixed_abs, tag = 'smem constant byte address 0x4 - core index']
  #allocation1 [shape = 'u32[144,128]{1,0:T(1,128)}', space=vmem, size = 0x12000, scoped, tag = 'internal scratch']
  #allocation2 [shape = 'f32[2,16]{1,0:T(2,128)}', space=vmem, size = 0x400, scoped, tag = 'scratch operand']
  #allocation3 [shape = 'f32[2,16]{1,0:T(2,128)}', space=vmem, size = 0x400, scoped, tag = 'scratch operand']
  %s0 = inlined_call_operand.hbm [shape: f32[2,16,256], index: 0, kind: input, shape index: {}]
  %s1 = inlined_call_operand.vmem [shape: f32[16,2], index: 1, kind: input, shape index: {}]
  %s2 = inlined_call_operand.vmem [shape: f32[2,16], index: 2, kind: input, shape index: {}]
  %s3 = inlined_call_operand.hbm [shape: f32[2,16], index: 3, kind: output, shape index: {}]
  %s4 = sld [smem:[#allocation0]]
  $region34: #{tpu_custom_call.1} parent=0
    _
  %s6 = ssub.s32 1, %s4
  %s7 = scalar_select 0, %s6, %s4
  $region1: #{tpu_custom_call.1} parent=0
    #allocation4 [shape = 'u8[32768]{0}', space=vmem, size = 0x8000, scoped, tag = 'input window, operand 0, single buffered']
    #allocation5 [shape = 's32[1]{0}', space=sflag, size = 0x4, scoped, tag = 'scoped memory for tpu_custom_call.1']
    #allocation6 [shape = 's32[1]{0}', space=sflag, size = 0x4, scoped, tag = 'scoped memory for tpu_custom_call.1']
    #allocation7 [shape = 'u8[1024]{0}', space=vmem, size = 0x400, scoped, tag = 'output window, operand 0, single buffered']
    %8 = vsyncpa [#allocation5], 0
    %9 = vsyncpa [#allocation6], 0
    // Predicated region
    $region2: #{tpu_custom_call.1} parent=1 // pred_check
      _
    $region3: #{tpu_custom_call.1} parent=1 // pred_check_branch
      %11 = sbr.rel (0) target = $region5
    $region4: #{tpu_custom_call.1} parent=1 // pred_region
      %s13 = ssub.s32 1024, 1024
      %14 = vsyncadd [#allocation5], %s13
      %s15 = sshll.u32 [#allocation4], 4
      %s16 = int_to_ptr.vmem [resolvable:$true] %s15
      %21 = dma.hbm_to_vmem [thread:$0]  %s0, 1024, %s16, [#allocation5], 256, 256, 16
    $region5: #{tpu_custom_call.1} parent=1 // pred_fallthru
      _
    // Predicated region
    $region6: #{tpu_custom_call.1} parent=1 // pred_check
      _
    $region7: #{tpu_custom_call.1} parent=1 // pred_check_branch
      %23 = sbr.rel (0) target = $region9
    $region8: #{tpu_custom_call.1} parent=1 // pred_region
      _
    $region9: #{tpu_custom_call.1} parent=1 // pred_fallthru
      _
    // Predicated region
    $region10: #{tpu_custom_call.1} parent=1 // pred_check
      _
    $region11: #{tpu_custom_call.1} parent=1 // pred_check_branch
      %25 = sbr.rel (0) target = $region13
    $region12: #{tpu_custom_call.1} parent=1 // pred_region
      _
    $region13: #{tpu_custom_call.1} parent=1 // pred_fallthru
      _
    // Predicated region
    $region14: #{tpu_custom_call.1} parent=1 // pred_check
      _
    $region15: #{tpu_custom_call.1} parent=1 // pred_check_branch
      %27 = sbr.rel (0) target = $region17
    $region16: #{tpu_custom_call.1} parent=1 // pred_region
      %28 = dma.done [#allocation5], 1024
    $region17: #{tpu_custom_call.1} parent=1 // pred_fallthru
      _
    %p29 = scmp.eq.s32.totalorder 0, 0
    // Predicated region
    $region18: #{tpu_custom_call.1} parent=1 // pred_check
      %p30 = pneg %p29
    $region19: #{tpu_custom_call.1} parent=1 // pred_check_branch
      %32 = sbr.rel (%p30) target = $region21
    $region20: #{tpu_custom_call.1} parent=1 // pred_region
      %vm33 = vcmask 123904
      %34 = vst.msk [vmem:[#allocation2] sm:$0x3] %vm33, 0.0
      %35 = vst.msk [vmem:[#allocation3] sm:$0x3] %vm33, -inf
    $region21: #{tpu_custom_call.1} parent=1 // pred_fallthru
      _
    %v36 = vld [vmem:[#allocation4] sm:$0xff]
    %v37 = vld [vmem:[#allocation4 + $0x8] sm:$0xff]
    %v38 = vld [vmem:[#allocation4 + $0x10] sm:$0xff]
    %v39 = vld [vmem:[#allocation4 + $0x18] sm:$0xff]
    %v40 = vld [vmem:[#allocation4 + $0x20] sm:$0xff]
    %v41 = vld [vmem:[#allocation4 + $0x28] sm:$0xff]
    %v42 = vld [vmem:[#allocation4 + $0x30] sm:$0xff]
    %v43 = vld [vmem:[#allocation4 + $0x38] sm:$0xff]
    %v44 = vmax.f32 %v36, %v37
    %45 = vmax.xlane.f32.xlu0 %v44
    %v46 = vpop.xlane.xlu0 %45
    %v47 = vmax.f32 %v38, %v39
    %48 = vmax.xlane.f32.xlu0 %v47
    %v49 = vpop.xlane.xlu0 %48
    %v50 = vmax.f32 %v40, %v41
    %51 = vmax.xlane.f32.xlu0 %v50
    %v52 = vpop.xlane.xlu0 %51
    %v53 = vmax.f32 %v42, %v43
    %54 = vmax.xlane.f32.xlu0 %v53
    %v55 = vpop.xlane.xlu0 %54
    %v56 = vld [vmem:[#allocation3] sm:$0x3]
    %v61 = vlaneseq
    %v62 = vand.u32 %v61, 127
    %v63 = vlaneseq
    %v64 = vshrl.u32 %v63, 7
    %v65 = vsub.s32 %v62, %v64
    %v66 = vrot.slane %v46, %v65
    %v67 = vadd.s32 %v62, 4294967288
    %v68 = vlaneseq
    %v69 = vshrl.u32 %v68, 7
    %v70 = vsub.s32 %v67, %v69
    %v71 = vrot.slane %v49, %v70
    %vm72 = vcmask 130112
    %v73 = vsel %vm72, %v71, %v66
    %v74 = vlaneseq
    %v75 = vshrl.u32 %v74, 7
    %v76 = vsub.s32 %v62, %v75
    %v77 = vrot.slane %v52, %v76
    %v78 = vlaneseq
    %v79 = vshrl.u32 %v78, 7
    %v80 = vsub.s32 %v67, %v79
    %v81 = vrot.slane %v55, %v80
    %v82 = vsel %vm72, %v81, %v77
    %vm83 = vcmask 1041409
    %v84 = vsel %vm83, %v82, %v73
    %v86 = vmax.f32 %v56, %v84
    %vm87 = vcmask 123904
    %88 = vst.msk [vmem:[#allocation3] sm:$0x3] %vm87, %v86
    %v89 = vld [vmem:[#allocation2] sm:$0x3]
    %v90 = vadd.f32 %v36, %v37
    %91 = vadd.xlane.f32.xlu0 %v90
    %v92 = vpop.xlane.xlu0 %91
    %v93 = vadd.f32 %v38, %v39
    %94 = vadd.xlane.f32.xlu0 %v93
    %v95 = vpop.xlane.xlu0 %94
    %v96 = vadd.f32 %v40, %v41
    %97 = vadd.xlane.f32.xlu0 %v96
    %v98 = vpop.xlane.xlu0 %97
    %v99 = vadd.f32 %v42, %v43
    %100 = vadd.xlane.f32.xlu0 %v99
    %v101 = vpop.xlane.xlu0 %100
    %v106 = vlaneseq
    %v107 = vshrl.u32 %v106, 7
    %v108 = vsub.s32 %v62, %v107
    %v109 = vrot.slane %v92, %v108
    %v110 = vlaneseq
    %v111 = vshrl.u32 %v110, 7
    %v112 = vsub.s32 %v67, %v111
    %v113 = vrot.slane %v95, %v112
    %v114 = vsel %vm72, %v113, %v109
    %v115 = vlaneseq
    %v116 = vshrl.u32 %v115, 7
    %v117 = vsub.s32 %v62, %v116
    %v118 = vrot.slane %v98, %v117
    %v119 = vlaneseq
    %v120 = vshrl.u32 %v119, 7
    %v121 = vsub.s32 %v67, %v120
    %v122 = vrot.slane %v101, %v121
    %v123 = vsel %vm72, %v122, %v118
    %v124 = vsel %vm83, %v123, %v114
    %v126 = vadd.f32 %v89, %v124
    %127 = vst.msk [vmem:[#allocation2] sm:$0x3] %vm87, %v126
    // Predicated region
    $region22: #{tpu_custom_call.1} parent=1 // pred_check
      %p128 = pneg %p29
    $region23: #{tpu_custom_call.1} parent=1 // pred_check_branch
      %130 = sbr.rel (%p128) target = $region25
    $region24: #{tpu_custom_call.1} parent=1 // pred_region
      %v131 = vld [vmem:[#allocation2] sm:$0x3]
      %v132 = vmul.f32 %v131, 0.00390625
      %v133 = vld [vmem:[#allocation3] sm:$0x3]
      %v135 = vrot.slane %v133, 6
      %vm137 = vcmask 1041408
      %v138 = vsel %vm137, %v132, %v135
      %v139 = vld [vmem:[%s1] sm:$0xff]
      %v140 = vld [vmem:[%s1 + $0x8] sm:$0xff]
      %vm141 = vcmask 130048
      %v143 = vsel %vm141, %v138, 0
      %145 = vmatprep.subr.mxu0 0.0
      %146 = vmatpush1.msra.mxu0 %v139
      %147 = vmatprep.subr.mxu0 0.0
      %148 = vmatpush1.msra.mxu0 %v140
      %149 = vmatprep.subr.mxu0 0.0
      %150 = vmatpush1.msra.mxu0 0.0
      %151 = vmatprep.subr.mxu0 0.0
      %152 = vmatpush1.msra.mxu0 0.0
      %153 = vmatprep.subr.mxu0 0.0
      %154 = vmatpush1.msra.mxu0 0.0
      %155 = vmatprep.subr.mxu0 0.0
      %156 = vmatpush1.msra.mxu0 0.0
      %157 = vmatprep.subr.mxu0 0.0
      %158 = vmatpush1.msra.mxu0 0.0
      %159 = vmatprep.subr.mxu0 0.0
      %160 = vmatpush1.msra.mxu0 0.0
      %161 = vmatprep.subr.mxu0 0.0
      %162 = vmatpush1.msra.mxu0 0.0
      %163 = vmatprep.subr.mxu0 0.0
      %164 = vmatpush1.msra.mxu0 0.0
      %165 = vmatprep.subr.mxu0 0.0
      %166 = vmatpush1.msra.mxu0 0.0
      %167 = vmatprep.subr.mxu0 0.0
      %168 = vmatpush1.msra.mxu0 0.0
      %169 = vmatprep.subr.mxu0 0.0
      %170 = vmatpush1.msra.mxu0 0.0
      %171 = vmatprep.subr.mxu0 0.0
      %172 = vmatpush1.msra.mxu0 0.0
      %173 = vmatprep.subr.mxu0 0.0
      %174 = vmatpush1.msra.mxu0 0.0
      %175 = vmatprep.subr.mxu0 0.0
      %176 = vmatpush1.msra.mxu0 0.0
      %177 = vmatprep.subr.mxu0 0.0
      %178 = vmatpush1.msra.mxu0 0.0
      %179 = vmatprep.subr.mxu0 0.0
      %180 = vmatpush1.msra.mxu0 0.0
      %181 = vmatprep.subr.mxu0 0.0
      %182 = vmatpush1.msra.mxu0 0.0
      %183 = vmatprep.subr.mxu0 0.0
      %184 = vmatpush1.msra.mxu0 0.0
      %185 = vmatprep.subr.mxu0 0.0
      %186 = vmatpush1.msra.mxu0 0.0
      %187 = vmatprep.subr.mxu0 0.0
      %188 = vmatpush1.msra.mxu0 0.0
      %189 = vmatprep.subr.mxu0 0.0
      %190 = vmatpush1.msra.mxu0 0.0
      %191 = vmatprep.subr.mxu0 0.0
      %192 = vmatpush1.msra.mxu0 0.0
      %193 = vmatprep.subr.mxu0 0.0
      %194 = vmatpush1.msra.mxu0 0.0
      %195 = vmatprep.subr.mxu0 0.0
      %196 = vmatpush1.msra.mxu0 0.0
      %197 = vmatprep.subr.mxu0 0.0
      %198 = vmatpush1.msra.mxu0 0.0
      %199 = vmatprep.subr.mxu0 0.0
      %200 = vmatpush1.msra.mxu0 0.0
      %201 = vmatprep.subr.mxu0 0.0
      %202 = vmatpush1.msra.mxu0 0.0
      %203 = vmatprep.subr.mxu0 0.0
      %204 = vmatpush1.msra.mxu0 0.0
      %205 = vmatprep.subr.mxu0 0.0
      %206 = vmatpush1.msra.mxu0 0.0
      %207 = vmatprep.subr.mxu0 0.0
      %208 = vmatpush1.msra.mxu0 0.0
      %209 = vmatprep.mubr.f32.mxu0 0.0
      %210 = vmatmul.mubr.f32.gmra.mrb[0].mxu0 %v143
      %v211 = vpop.f32.mrb[0].mxu0
      %v212 = vadd.f32 0.0, %v211
      %v213 = vpop.f32.mrb[0].mxu0
      %214 = vdwg.mxu0
      %v215 = vmax.f32 %v212, 0.0
      %v216 = vld [vmem:[%s2] sm:$0x3]
      %vm217 = vcmask 15360
      %v219 = vsel %vm217, %v215, 0
      %v222 = vsel %vm137, %v216, 0
      %224 = vmatprep.subr.mxu0 0.0
      %225 = vmatpush1.msra.mxu0 %v222
      %226 = vmatprep.subr.mxu0 0.0
      %227 = vmatpush1.msra.mxu0 0.0
      %228 = vmatprep.subr.mxu0 0.0
      %229 = vmatpush1.msra.mxu0 0.0
      %230 = vmatprep.subr.mxu0 0.0
      %231 = vmatpush1.msra.mxu0 0.0
      %232 = vmatprep.subr.mxu0 0.0
      %233 = vmatpush1.msra.mxu0 0.0
      %234 = vmatprep.subr.mxu0 0.0
      %235 = vmatpush1.msra.mxu0 0.0
      %236 = vmatprep.subr.mxu0 0.0
      %237 = vmatpush1.msra.mxu0 0.0
      %238 = vmatprep.subr.mxu0 0.0
      %239 = vmatpush1.msra.mxu0 0.0
      %240 = vmatprep.subr.mxu0 0.0
      %241 = vmatpush1.msra.mxu0 0.0
      %242 = vmatprep.subr.mxu0 0.0
      %243 = vmatpush1.msra.mxu0 0.0
      %244 = vmatprep.subr.mxu0 0.0
      %245 = vmatpush1.msra.mxu0 0.0
      %246 = vmatprep.subr.mxu0 0.0
      %247 = vmatpush1.msra.mxu0 0.0
      %248 = vmatprep.subr.mxu0 0.0
      %249 = vmatpush1.msra.mxu0 0.0
      %250 = vmatprep.subr.mxu0 0.0
      %251 = vmatpush1.msra.mxu0 0.0
      %252 = vmatprep.subr.mxu0 0.0
      %253 = vmatpush1.msra.mxu0 0.0
      %254 = vmatprep.subr.mxu0 0.0
      %255 = vmatpush1.msra.mxu0 0.0
      %256 = vmatprep.subr.mxu0 0.0
      %257 = vmatpush1.msra.mxu0 0.0
      %258 = vmatprep.subr.mxu0 0.0
      %259 = vmatpush1.msra.mxu0 0.0
      %260 = vmatprep.subr.mxu0 0.0
      %261 = vmatpush1.msra.mxu0 0.0
      %262 = vmatprep.subr.mxu0 0.0
      %263 = vmatpush1.msra.mxu0 0.0
      %264 = vmatprep.subr.mxu0 0.0
      %265 = vmatpush1.msra.mxu0 0.0
      %266 = vmatprep.subr.mxu0 0.0
      %267 = vmatpush1.msra.mxu0 0.0
      %268 = vmatprep.subr.mxu0 0.0
      %269 = vmatpush1.msra.mxu0 0.0
      %270 = vmatprep.subr.mxu0 0.0
      %271 = vmatpush1.msra.mxu0 0.0
      %272 = vmatprep.subr.mxu0 0.0
      %273 = vmatpush1.msra.mxu0 0.0
      %274 = vmatprep.subr.mxu0 0.0
      %275 = vmatpush1.msra.mxu0 0.0
      %276 = vmatprep.subr.mxu0 0.0
      %277 = vmatpush1.msra.mxu0 0.0
      %278 = vmatprep.subr.mxu0 0.0
      %279 = vmatpush1.msra.mxu0 0.0
      %280 = vmatprep.subr.mxu0 0.0
      %281 = vmatpush1.msra.mxu0 0.0
      %282 = vmatprep.subr.mxu0 0.0
      %283 = vmatpush1.msra.mxu0 0.0
      %284 = vmatprep.subr.mxu0 0.0
      %285 = vmatpush1.msra.mxu0 0.0
      %286 = vmatprep.subr.mxu0 0.0
      %287 = vmatpush1.msra.mxu0 0.0
      %288 = vmatprep.mubr.f32.mxu0 0.0
      %289 = vmatmul.mubr.f32.gmra.mrb[0].mxu0 %v219
      %v290 = vpop.f32.mrb[0].mxu0
      %v291 = vadd.f32 0.0, %v290
      %v292 = vpop.f32.mrb[0].mxu0
      %293 = vdwg.mxu0
      %v295 = vrot.slane %v291, 2
      %v297 = vadd.f32 %v291, %v295
      %v298 = vxor.u32 %v297, 2147483648
      %v299 = vmul.f32 %v298, 1.442695
      %v300 = vpow.pop %v299
      %v301 = vadd.f32 %v300, 1.0
      %v302 = vrcp.pop %v301
      %v303 = vmul.f32 1.0, %v302
      %304 = vst.msk [vmem:[#allocation7] sm:$0x3] %vm87, %v303
    $region25: #{tpu_custom_call.1} parent=1 // pred_fallthru
      _
    // Predicated region
    $region26: #{tpu_custom_call.1} parent=1 // pred_check
      _
    $region27: #{tpu_custom_call.1} parent=1 // pred_check_branch
      %306 = sbr.rel (0) target = $region29
    $region28: #{tpu_custom_call.1} parent=1 // pred_region
      %s308 = ssub.s32 32, 32
      %309 = vsyncadd [#allocation6], %s308
      %s311 = sshll.u32 [#allocation7], 4
      %s312 = int_to_ptr.vmem [resolvable:$true] %s311
      %314 = dma.vmem_to_hbm [thread:$0]  %s312, 32, %s3, [#allocation6]
    $region29: #{tpu_custom_call.1} parent=1 // pred_fallthru
      _
    // Predicated region
    $region30: #{tpu_custom_call.1} parent=1 // pred_check
      _
    $region31: #{tpu_custom_call.1} parent=1 // pred_check_branch
      %316 = sbr.rel (0) target = $region33
    $region32: #{tpu_custom_call.1} parent=1 // pred_region
      %317 = dma.done [#allocation6], 32
    $region33: #{tpu_custom_call.1} parent=1 // pred_fallthru
      _
    %318 = vsyncpa [#allocation5], 1
    %319 = vsyncpa [#allocation6], 1

</llo_original>
